<compile_context>
chip_gen: v5e
topology: v5e:2x2
jax: 0.10.0
libtpu: 0.0.40
codegen_flags: <defaults>
</compile_context>

<pallas_src>
import numpy as np
import jax
import jax.numpy as jnp
from jax.experimental import pallas as pl
from jax.experimental.pallas import tpu as pltpu

N_PAD = 128        # lane-padded sequence length (max 127 categories + origin)
TB_MAX = 512       # max rows per grid step (amortizes ~0.35 us per-step overhead)
CHUNK_MAX = 64     # rows kept in vregs through the 8-step scan (v5e vst relief)
SUBLANE_I8 = 32    # int8 sublane tile


def _round_up(x, m):
    return (x + m - 1) // m * m


def _make_kernel(tb, chunk):
    n_chunks = tb // chunk

    def rel2abs_kernel(cats_ref, tbl_ref, out_ref):
        # cats_ref: (tb, N_PAD) int8 in VMEM   -- categories 0..5 (0 = padding)
        # tbl_ref:  (8,) float32 in SMEM       -- [origin, c1..c5, 0, 0] (clamps pre-applied)
        # out_ref:  (tb, N_PAD) float32        -- out[b, j] = origin + sum_{i<j} change[b, i]
        origin = tbl_ref[0]
        cvals = [tbl_ref[k] for k in range(1, 6)]

        # (1, 128) lane index, broadcast against the chunk tiles (not materialized
        # at full tile shape).
        lane = jax.lax.broadcasted_iota(jnp.int32, (1, N_PAD), 1)

        @pl.loop(0, n_chunks)
        def _(ci):
            r0 = pl.multiple_of(ci * chunk, chunk)
            rows = pl.ds(r0, chunk)

            cats = cats_ref[rows, :].astype(jnp.int32)          # (chunk, 128)
            change = jnp.zeros(cats.shape, jnp.float32)
            for k in range(5):
                change = jnp.where(cats == (k + 1), cvals[k], change)

            # Exclusive prefix sum along lanes via a log2-step (Hillis-Steele)
            # scan: shift right by 1 with zero fill (makes it exclusive), then
            # 7 steps of roll+mask+add. pltpu.roll uses the XLU, the masked
            # adds the VPU -- no MXU, no 128x128 mask materialization.
            x = jnp.where(lane >= 1, pltpu.roll(change, 1, 1), 0.0)
            shift = 1
            while shift < N_PAD:
                x = x + jnp.where(lane >= shift, pltpu.roll(x, shift, 1), 0.0)
                shift *= 2

            out_ref[rows, :] = origin + x

    return rel2abs_kernel


def make_change_table(origin_weight=0.0, big_decrease=-0.3, decrease=-0.1,
                      same=0.0, increase=0.1, big_increase=0.3, epsilon=0.05):
    """Deterministic parameters (torch.nn.init.constant_) with the per-category
    clamp arithmetic hoisted out of the kernel: [origin, c1..c5, 0, 0]."""
    c1 = min(big_decrease, min(0.0, decrease)) - epsilon                      # big decrease
    c2 = float(np.clip(decrease, big_decrease + epsilon, 0.0 - epsilon))     # decrease
    c3 = same                                                                 # same
    c4 = float(np.clip(increase, 0.0 + epsilon, big_increase - epsilon))     # increase
    c5 = max(big_increase, max(0.0, increase) + epsilon)                      # big increase
    return jnp.array([origin_weight, c1, c2, c3, c4, c5, 0.0, 0.0],
                     dtype=jnp.float32)


def relative_to_absolute_batched(cats_padded, table, tb_max=TB_MAX):
    """cats_padded: (B, N_PAD) integer array with categories 1..5
    (0 = padding -> change 0). Returns (B, N_PAD) float32 trajectories
    out[b, j] = origin + sum_{i<j} change[b, i]; slice row b to n_b+1 entries."""
    B, n_pad = cats_padded.shape
    assert n_pad == N_PAD, f"expected lane-padded width {N_PAD}, got {n_pad}"

    # Rows per grid step: as large as possible to amortize per-step overhead,
    # but capped at ceil(B/2) (rounded to the int8 sublane tile) so any batch
    # with >= 2 tiles of work still produces >= 2 grid steps and both v7x
    # TensorCores get a share via dimension_semantics=("parallel",).
    tb = max(SUBLANE_I8, min(tb_max, _round_up(pl.cdiv(B, 2), SUBLANE_I8)))
    chunk = min(CHUNK_MAX, tb)

    B_pad = _round_up(B, tb)
    cats_i8 = cats_padded.astype(jnp.int8)
    if B_pad != B:
        cats_i8 = jnp.pad(cats_i8, ((0, B_pad - B), (0, 0)))   # pad rows -> category 0

    out = pl.pallas_call(
        _make_kernel(tb, chunk),
        out_shape=jax.ShapeDtypeStruct((B_pad, N_PAD), jnp.float32),
        grid=(B_pad // tb,),
        in_specs=[
            pl.BlockSpec((tb, N_PAD), lambda b: (b, 0)),
            pl.BlockSpec(memory_space=pltpu.MemorySpace.SMEM),
        ],
        out_specs=pl.BlockSpec((tb, N_PAD), lambda b: (b, 0)),
        compiler_params=pltpu.CompilerParams(
            dimension_semantics=("parallel",)),
    )(cats_i8, table)
    return out[:B]


def relative_to_absolute(annotation_series, table):
    """Single-sequence forward (matches the torch module's forward).
    Per the performance review a full pallas_call dispatch for one vreg of work
    is pure overhead, so this path uses a plain jnp exclusive cumsum with the
    same semantics; use relative_to_absolute_batched for the Pallas path."""
    n = int(annotation_series.shape[0])
    if n > N_PAD - 1:
        raise ValueError(f"sequence length {n} exceeds supported max {N_PAD - 1}")
    cats = annotation_series.astype(jnp.int32)
    change = jnp.zeros((n,), jnp.float32)
    for k in range(5):
        change = jnp.where(cats == (k + 1), table[1 + k], change)
    traj = table[0] + jnp.concatenate(
        [jnp.zeros((1,), jnp.float32), jnp.cumsum(change)])
    return traj


def reference(cats, origin_weight=0.0, big_decrease=-0.3, decrease=-0.1,
              same=0.0, increase=0.1, big_increase=0.3, epsilon=0.05):
    # pure-numpy re-implementation of the torch forward (for verification)
    c1 = min(big_decrease, min(0.0, decrease)) - epsilon
    c2 = float(np.clip(decrease, big_decrease + epsilon, 0.0 - epsilon))
    c3 = same
    c4 = float(np.clip(increase, 0.0 + epsilon, big_increase - epsilon))
    c5 = max(big_increase, max(0.0, increase) + epsilon)
    table = {1: c1, 2: c2, 3: c3, 4: c4, 5: c5}
    res = [origin_weight]
    for c in np.asarray(cats):
        c = int(c)
        if c == 0:
            continue
        res.append(res[-1] + table[c])
    return np.array(res, dtype=np.float32)


if __name__ == "__main__":
    table = make_change_table()

    # --- batched Pallas path (grid over batch tiles, "parallel" axis) ---
    B, seq = 64, 8
    # categories 1..5 (category 0 would mean "skip", see TODO above)
    cats_b = jax.random.randint(jax.random.PRNGKey(0), (B, seq), 1, 6,
                                dtype=jnp.int32)
    cats_b_padded = jnp.zeros((B, N_PAD), jnp.int32).at[:, :seq].set(cats_b)
    out_b = jax.block_until_ready(relative_to_absolute_batched(cats_b_padded,
                                                               table))
    cats_b_np = np.asarray(cats_b)
    out_b_np = np.asarray(out_b)
    for b in range(B):
        ref_b = reference(cats_b_np[b])
        np.testing.assert_allclose(out_b_np[b, : seq + 1], ref_b,
                                   rtol=1e-5, atol=1e-6)

    # --- single-sequence path (matches the torch module's forward) ---
    seq1 = cats_b_np[0]
    out1 = jax.block_until_ready(relative_to_absolute(jnp.asarray(seq1), table))
    np.testing.assert_allclose(np.asarray(out1), reference(seq1),
                               rtol=1e-5, atol=1e-6)

    print("KERNEL_OK")
</pallas_src>

<mosaic_0001>
module attributes {stable_mosaic.version = 11 : i64} {
  func.func @rel2abs_kernel(%arg0: i32, %arg1: memref<32x128xi8, #tpu.memory_space<vmem>>, %arg2: memref<8xf32, #tpu.memory_space<smem>>, %arg3: memref<32x128xf32, #tpu.memory_space<vmem>>) attributes {dimension_semantics = [#tpu.dimension_semantics<parallel>], iteration_bounds = array<i64: 2>, scalar_prefetch = 0 : i64, scratch_operands = 0 : i64, tpu.core_type = #tpu.core_type<tc>, window_params = [{transform_indices = @transform_0, window_bounds = array<i64: 32, 128>}, {transform_indices = @transform_1, window_bounds = array<i64: 8>}, {transform_indices = @transform_2, window_bounds = array<i64: 32, 128>}]} {
    %c0 = arith.constant 0 : index
    %0 = memref.load %arg2[%c0] : memref<8xf32, #tpu.memory_space<smem>>
    %c1 = arith.constant 1 : index
    %1 = memref.load %arg2[%c1] : memref<8xf32, #tpu.memory_space<smem>>
    %c2 = arith.constant 2 : index
    %2 = memref.load %arg2[%c2] : memref<8xf32, #tpu.memory_space<smem>>
    %c3 = arith.constant 3 : index
    %3 = memref.load %arg2[%c3] : memref<8xf32, #tpu.memory_space<smem>>
    %c4 = arith.constant 4 : index
    %4 = memref.load %arg2[%c4] : memref<8xf32, #tpu.memory_space<smem>>
    %c5 = arith.constant 5 : index
    %5 = memref.load %arg2[%c5] : memref<8xf32, #tpu.memory_space<smem>>
    %6 = tpu.iota {dimensions = array<i32: 1>} : vector<1x128xi32>
    %c0_i32 = arith.constant 0 : i32
    %c1_i32 = arith.constant 1 : i32
    %7 = arith.muli %c0_i32, %c1_i32 : i32
    %c0_i32_0 = arith.constant 0 : i32
    %8 = arith.addi %c0_i32_0, %7 : i32
    %c32_i32 = arith.constant 32 : i32
    %9 = arith.muli %8, %c32_i32 : i32
    %10 = tpu.assume_multiple %9, 32 : i32
    %11 = arith.index_cast %10 : i32 to index
    %c0_1 = arith.constant 0 : index
    %12 = vector.load %arg1[%11, %c0_1] : memref<32x128xi8, #tpu.memory_space<vmem>>, vector<32x128xi8>
    %13 = arith.extsi %12 : vector<32x128xi8> to vector<32x128xi32>
    %cst = arith.constant 0.000000e+00 : f32
    %14 = vector.broadcast %cst : f32 to vector<32x128xf32>
    %c1_i32_2 = arith.constant 1 : i32
    %15 = vector.broadcast %c1_i32_2 : i32 to vector<32x128xi32>
    %16 = arith.cmpi eq, %13, %15 : vector<32x128xi32>
    %17 = vector.broadcast %1 : f32 to vector<32x128xf32>
    %18 = arith.select %16, %17, %14 : vector<32x128xi1>, vector<32x128xf32>
    %c2_i32 = arith.constant 2 : i32
    %19 = vector.broadcast %c2_i32 : i32 to vector<32x128xi32>
    %20 = arith.cmpi eq, %13, %19 : vector<32x128xi32>
    %21 = vector.broadcast %2 : f32 to vector<32x128xf32>
    %22 = arith.select %20, %21, %18 : vector<32x128xi1>, vector<32x128xf32>
    %c3_i32 = arith.constant 3 : i32
    %23 = vector.broadcast %c3_i32 : i32 to vector<32x128xi32>
    %24 = arith.cmpi eq, %13, %23 : vector<32x128xi32>
    %25 = vector.broadcast %3 : f32 to vector<32x128xf32>
    %26 = arith.select %24, %25, %22 : vector<32x128xi1>, vector<32x128xf32>
    %c4_i32 = arith.constant 4 : i32
    %27 = vector.broadcast %c4_i32 : i32 to vector<32x128xi32>
    %28 = arith.cmpi eq, %13, %27 : vector<32x128xi32>
    %29 = vector.broadcast %4 : f32 to vector<32x128xf32>
    %30 = arith.select %28, %29, %26 : vector<32x128xi1>, vector<32x128xf32>
    %c5_i32 = arith.constant 5 : i32
    %31 = vector.broadcast %c5_i32 : i32 to vector<32x128xi32>
    %32 = arith.cmpi eq, %13, %31 : vector<32x128xi32>
    %33 = vector.broadcast %5 : f32 to vector<32x128xf32>
    %34 = arith.select %32, %33, %30 : vector<32x128xi1>, vector<32x128xf32>
    %c1_i32_3 = arith.constant 1 : i32
    %35 = vector.broadcast %c1_i32_3 : i32 to vector<1x128xi32>
    %36 = arith.cmpi sge, %6, %35 : vector<1x128xi32>
    %c1_i32_4 = arith.constant 1 : i32
    %37 = tpu.dynamic_rotate %34 by %c1_i32_4 dim 1 : vector<32x128xf32>, i32 -> vector<32x128xf32>
    %cst_5 = arith.constant 0.000000e+00 : f32
    %38 = vector.shape_cast %36 : vector<1x128xi1> to vector<1x128xi1>
    %39 = vector.broadcast %38 : vector<1x128xi1> to vector<32x128xi1>
    %40 = vector.broadcast %cst_5 : f32 to vector<32x128xf32>
    %41 = arith.select %39, %37, %40 : vector<32x128xi1>, vector<32x128xf32>
    %c1_i32_6 = arith.constant 1 : i32
    %42 = vector.broadcast %c1_i32_6 : i32 to vector<1x128xi32>
    %43 = arith.cmpi sge, %6, %42 : vector<1x128xi32>
    %c1_i32_7 = arith.constant 1 : i32
    %44 = tpu.dynamic_rotate %41 by %c1_i32_7 dim 1 : vector<32x128xf32>, i32 -> vector<32x128xf32>
    %cst_8 = arith.constant 0.000000e+00 : f32
    %45 = vector.shape_cast %43 : vector<1x128xi1> to vector<1x128xi1>
    %46 = vector.broadcast %45 : vector<1x128xi1> to vector<32x128xi1>
    %47 = vector.broadcast %cst_8 : f32 to vector<32x128xf32>
    %48 = arith.select %46, %44, %47 : vector<32x128xi1>, vector<32x128xf32>
    %49 = arith.addf %41, %48 : vector<32x128xf32>
    %c2_i32_9 = arith.constant 2 : i32
    %50 = vector.broadcast %c2_i32_9 : i32 to vector<1x128xi32>
    %51 = arith.cmpi sge, %6, %50 : vector<1x128xi32>
    %c2_i32_10 = arith.constant 2 : i32
    %52 = tpu.dynamic_rotate %49 by %c2_i32_10 dim 1 : vector<32x128xf32>, i32 -> vector<32x128xf32>
    %cst_11 = arith.constant 0.000000e+00 : f32
    %53 = vector.shape_cast %51 : vector<1x128xi1> to vector<1x128xi1>
    %54 = vector.broadcast %53 : vector<1x128xi1> to vector<32x128xi1>
    %55 = vector.broadcast %cst_11 : f32 to vector<32x128xf32>
    %56 = arith.select %54, %52, %55 : vector<32x128xi1>, vector<32x128xf32>
    %57 = arith.addf %49, %56 : vector<32x128xf32>
    %c4_i32_12 = arith.constant 4 : i32
    %58 = vector.broadcast %c4_i32_12 : i32 to vector<1x128xi32>
    %59 = arith.cmpi sge, %6, %58 : vector<1x128xi32>
    %c4_i32_13 = arith.constant 4 : i32
    %60 = tpu.dynamic_rotate %57 by %c4_i32_13 dim 1 : vector<32x128xf32>, i32 -> vector<32x128xf32>
    %cst_14 = arith.constant 0.000000e+00 : f32
    %61 = vector.shape_cast %59 : vector<1x128xi1> to vector<1x128xi1>
    %62 = vector.broadcast %61 : vector<1x128xi1> to vector<32x128xi1>
    %63 = vector.broadcast %cst_14 : f32 to vector<32x128xf32>
    %64 = arith.select %62, %60, %63 : vector<32x128xi1>, vector<32x128xf32>
    %65 = arith.addf %57, %64 : vector<32x128xf32>
    %c8_i32 = arith.constant 8 : i32
    %66 = vector.broadcast %c8_i32 : i32 to vector<1x128xi32>
    %67 = arith.cmpi sge, %6, %66 : vector<1x128xi32>
    %c8_i32_15 = arith.constant 8 : i32
    %68 = tpu.dynamic_rotate %65 by %c8_i32_15 dim 1 : vector<32x128xf32>, i32 -> vector<32x128xf32>
    %cst_16 = arith.constant 0.000000e+00 : f32
    %69 = vector.shape_cast %67 : vector<1x128xi1> to vector<1x128xi1>
    %70 = vector.broadcast %69 : vector<1x128xi1> to vector<32x128xi1>
    %71 = vector.broadcast %cst_16 : f32 to vector<32x128xf32>
    %72 = arith.select %70, %68, %71 : vector<32x128xi1>, vector<32x128xf32>
    %73 = arith.addf %65, %72 : vector<32x128xf32>
    %c16_i32 = arith.constant 16 : i32
    %74 = vector.broadcast %c16_i32 : i32 to vector<1x128xi32>
    %75 = arith.cmpi sge, %6, %74 : vector<1x128xi32>
    %c16_i32_17 = arith.constant 16 : i32
    %76 = tpu.dynamic_rotate %73 by %c16_i32_17 dim 1 : vector<32x128xf32>, i32 -> vector<32x128xf32>
    %cst_18 = arith.constant 0.000000e+00 : f32
    %77 = vector.shape_cast %75 : vector<1x128xi1> to vector<1x128xi1>
    %78 = vector.broadcast %77 : vector<1x128xi1> to vector<32x128xi1>
    %79 = vector.broadcast %cst_18 : f32 to vector<32x128xf32>
    %80 = arith.select %78, %76, %79 : vector<32x128xi1>, vector<32x128xf32>
    %81 = arith.addf %73, %80 : vector<32x128xf32>
    %c32_i32_19 = arith.constant 32 : i32
    %82 = vector.broadcast %c32_i32_19 : i32 to vector<1x128xi32>
    %83 = arith.cmpi sge, %6, %82 : vector<1x128xi32>
    %c32_i32_20 = arith.constant 32 : i32
    %84 = tpu.dynamic_rotate %81 by %c32_i32_20 dim 1 : vector<32x128xf32>, i32 -> vector<32x128xf32>
    %cst_21 = arith.constant 0.000000e+00 : f32
    %85 = vector.shape_cast %83 : vector<1x128xi1> to vector<1x128xi1>
    %86 = vector.broadcast %85 : vector<1x128xi1> to vector<32x128xi1>
    %87 = vector.broadcast %cst_21 : f32 to vector<32x128xf32>
    %88 = arith.select %86, %84, %87 : vector<32x128xi1>, vector<32x128xf32>
    %89 = arith.addf %81, %88 : vector<32x128xf32>
    %c64_i32 = arith.constant 64 : i32
    %90 = vector.broadcast %c64_i32 : i32 to vector<1x128xi32>
    %91 = arith.cmpi sge, %6, %90 : vector<1x128xi32>
    %c64_i32_22 = arith.constant 64 : i32
    %92 = tpu.dynamic_rotate %89 by %c64_i32_22 dim 1 : vector<32x128xf32>, i32 -> vector<32x128xf32>
    %cst_23 = arith.constant 0.000000e+00 : f32
    %93 = vector.shape_cast %91 : vector<1x128xi1> to vector<1x128xi1>
    %94 = vector.broadcast %93 : vector<1x128xi1> to vector<32x128xi1>
    %95 = vector.broadcast %cst_23 : f32 to vector<32x128xf32>
    %96 = arith.select %94, %92, %95 : vector<32x128xi1>, vector<32x128xf32>
    %97 = arith.addf %89, %96 : vector<32x128xf32>
    %98 = vector.broadcast %0 : f32 to vector<32x128xf32>
    %99 = arith.addf %98, %97 : vector<32x128xf32>
    %100 = arith.index_cast %10 : i32 to index
    %c0_24 = arith.constant 0 : index
    %101 = vector.load %arg3[%100, %c0_24] : memref<32x128xf32, #tpu.memory_space<vmem>>, vector<32x128xf32>
    tpu.vector_store %arg3[%100, %c0_24], %99 {strides = array<i32>} : memref<32x128xf32, #tpu.memory_space<vmem>>, vector<32x128xf32>,
    %c1_i32_25 = arith.constant 1 : i32
    return
  }
  func.func @transform_0(%arg0: i32) -> (i32, i32) {
    %c0_i32 = arith.constant 0 : i32
    %c0_i32_0 = arith.constant 0 : i32
    return %arg0, %c0_i32 : i32, i32
  }
  func.func @transform_1(%arg0: i32) -> i32 {
    %c0_i32 = arith.constant 0 : i32
    %c0_i32_0 = arith.constant 0 : i32
    return %c0_i32 : i32
  }
  func.func @transform_2(%arg0: i32) -> (i32, i32) {
    %c0_i32 = arith.constant 0 : i32
    %c0_i32_0 = arith.constant 0 : i32
    return %arg0, %c0_i32 : i32, i32
  }
}

</mosaic_0001>

<llo_original>
// kernel: tpu_custom_call.1
$region0: #{tpu_custom_call.1}
  #allocation0 [shape = 'u32[]', space=smem, size = 0x4, offset = 0x4, fixed_abs, tag = 'smem constant byte address 0x4 - core index']
  #allocation1 [shape = 'u32[72,128]{1,0:T(1,128)}', space=vmem, size = 0x9000, scoped, tag = 'internal scratch']
  %s0 = inlined_call_operand.hbm [shape: s8[64,128], index: 0, kind: input, shape index: {}]
  %s1 = inlined_call_operand.hbm [shape: f32[8], index: 1, kind: input, shape index: {}]
  %s2 = inlined_call_operand.hbm [shape: f32[64,128], index: 2, kind: output, shape index: {}]
  %s3 = sld [smem:[#allocation0]]
  $region49: #{tpu_custom_call.1} parent=0
    _
  %s5 = ssub.s32 1, %s3
  %s6 = scalar_select 0, %s5, %s3
  $region1: #{tpu_custom_call.1} parent=0
    #allocation2 [shape = 'u8[8192]{0}', space=vmem, size = 0x2000, scoped, tag = 'input window, operand 0']
    #allocation3 [shape = 's32[2]{0}', space=sflag, size = 0x8, scoped, tag = 'scoped memory for tpu_custom_call.1']
    #allocation4 [shape = 's32[2]{0}', space=sflag, size = 0x8, scoped, tag = 'scoped memory for tpu_custom_call.1']
    #allocation5 [shape = 's32[2]{0}', space=sflag, size = 0x8, scoped, tag = 'scoped memory for tpu_custom_call.1']
    #allocation6 [shape = 'u8[512]{0}', space=smem, size = 0x200, scoped, tag = 'input window, operand 1, single buffered']
    #allocation7 [shape = 'u8[32768]{0}', space=vmem, size = 0x8000, scoped, tag = 'output window, operand 0']
    %7 = vsyncpa [#allocation3], 0
    %s8 = scalar_lea.sflag [#allocation3], 1
    %9 = vsyncpa %s8, 0
    %10 = vsyncpa [#allocation5], 0
    %11 = vsyncpa [#allocation4], 0
    %s12 = scalar_lea.sflag [#allocation4], 1
    %13 = vsyncpa %s12, 0
    loop: start=0, step=1, limit=4
    $region2: #{tpu_custom_call.1} parent=1 // loop_pre_header
      _
    $region3: #{tpu_custom_call.1} parent=1 // loop_header
      %s15 = sphi 0, %s19
      %p16 = scmp.ge.s32.totalorder %s15, 4
      %s25 = sphi 0, %s27
      %s28 = sphi 0, %s25
      %s29 = sphi 0, %s28
      %s45 = sphi 0, %s29
      %s49 = sphi 0, %s49
      %s51 = sphi 0, %s49
      %s52 = sphi 0, %s51
      %s66 = sphi 0, %s52
      %s72 = sphi 0, %s74
      %s75 = sphi 0, %s72
      %s76 = sphi 0, %s75
      %s92 = sphi 0, %s76
    $region4: #{tpu_custom_call.1} parent=1 // loop_header_branch
      %18 = sbr.rel (%p16) target = $region8
    $region5: #{tpu_custom_call.1} parent=1 // loop_body
      %s20 = ssub.s32 %s15, 1
      %s21 = ssub.s32 %s15, 2
      %s22 = sadd.s32 %s15, 1
      %s23 = ssub.s32 %s15, %s22
      %p24 = scmp.eq.s32.totalorder %s23, 0
      %s26 = sadd.s32 %s25, 1
      %s27 = scalar_select %p24, %s25, %s26
      %p30 = pneg %p24
      %p31 = scmp.eq.s32.totalorder %s15, 1
      %p32 = por %p30, %p31
      %p33 = scmp.ne.s32.totalorder %s25, %s28
      %p34 = scmp.eq.s32.totalorder %s15, 0
      %p35 = por %p33, %p34
      %p36 = scmp.ne.s32.totalorder %s25, %s28
      %p37 = scmp.eq.s32.totalorder %s20, 1
      %p38 = por %p36, %p37
      %p39 = scmp.ne.s32.totalorder %s28, %s29
      %p40 = scmp.eq.s32.totalorder %s20, 0
      %p41 = por %p39, %p40
      %p42 = scmp.ne.s32.totalorder %s28, %s29
      %p43 = scmp.eq.s32.totalorder %s21, 1
      %p44 = por %p42, %p43
      %p46 = scmp.ne.s32.totalorder %s29, %s45
      %p47 = scmp.eq.s32.totalorder %s21, 0
      %p48 = por %p46, %p47
      %s50 = sadd.s32 %s49, 1
      %p53 = scmp.eq.s32.totalorder %s15, 1
      %p54 = scmp.ne.s32.totalorder %s49, %s51
      %p55 = scmp.eq.s32.totalorder %s15, 0
      %p56 = por %p54, %p55
      %p57 = scmp.ne.s32.totalorder %s49, %s51
      %p58 = scmp.eq.s32.totalorder %s20, 1
      %p59 = por %p57, %p58
      %p60 = scmp.ne.s32.totalorder %s51, %s52
      %p61 = scmp.eq.s32.totalorder %s20, 0
      %p62 = por %p60, %p61
      %p63 = scmp.ne.s32.totalorder %s51, %s52
      %p64 = scmp.eq.s32.totalorder %s21, 1
      %p65 = por %p63, %p64
      %p67 = scmp.ne.s32.totalorder %s52, %s66
      %p68 = scmp.eq.s32.totalorder %s21, 0
      %p69 = por %p67, %p68
      %s70 = ssub.s32 %s15, %s22
      %p71 = scmp.eq.s32.totalorder %s70, 0
      %s73 = sadd.s32 %s72, 1
      %s74 = scalar_select %p71, %s72, %s73
      %p77 = pneg %p71
      %p78 = scmp.eq.s32.totalorder %s15, 1
      %p79 = por %p77, %p78
      %p80 = scmp.ne.s32.totalorder %s72, %s75
      %p81 = scmp.eq.s32.totalorder %s15, 0
      %p82 = por %p80, %p81
      %p83 = scmp.ne.s32.totalorder %s72, %s75
      %p84 = scmp.eq.s32.totalorder %s20, 1
      %p85 = por %p83, %p84
      %p86 = scmp.ne.s32.totalorder %s75, %s76
      %p87 = scmp.eq.s32.totalorder %s20, 0
      %p88 = por %p86, %p87
      %p89 = scmp.ne.s32.totalorder %s75, %s76
      %p90 = scmp.eq.s32.totalorder %s21, 1
      %p91 = por %p89, %p90
      %p93 = scmp.ne.s32.totalorder %s76, %s92
      %p94 = scmp.eq.s32.totalorder %s21, 0
      %p95 = por %p93, %p94
      %p96 = scmp.le.s32.totalorder 1, %s15
      %p97 = scmp.lt.s32.totalorder %s15, 3
      %p98 = pnand %p96, %p97
      %p99 = pneg %p98
      // Predicated region
      $region9: #{tpu_custom_call.1} parent=5 // pred_check
        _
      $region10: #{tpu_custom_call.1} parent=5 // pred_check_branch
        %101 = sbr.rel (%p98) target = $region12
      $region11: #{tpu_custom_call.1} parent=5 // pred_region
        %s102 = ssub.s32 %s15, 1
        // Predicated region
        $region13: #{tpu_custom_call.1} parent=11 // pred_check
          %p103 = pneg %p62
        $region14: #{tpu_custom_call.1} parent=11 // pred_check_branch
          %105 = sbr.rel (%p103) target = $region16
        $region15: #{tpu_custom_call.1} parent=11 // pred_region
          %107 = vsyncadd [#allocation5], 0
          %s109 = sshll.u32 %s1, 4
          %s110 = int_to_ptr.hbm [resolvable:$true] %s109
          %112 = dma.hbm_to_smem %s110, 16, [#allocation6], [#allocation5]
        $region16: #{tpu_custom_call.1} parent=11 // pred_fallthru
          _
      $region12: #{tpu_custom_call.1} parent=5 // pred_fallthru
        _
      %p113 = scmp.lt.s32.totalorder %s15, 2
      // Predicated region
      $region17: #{tpu_custom_call.1} parent=5 // pred_check
        %p114 = pneg %p113
      $region18: #{tpu_custom_call.1} parent=5 // pred_check_branch
        %116 = sbr.rel (%p114) target = $region20
      $region19: #{tpu_custom_call.1} parent=5 // pred_region
        // Predicated region
        $region21: #{tpu_custom_call.1} parent=19 // pred_check
          %p117 = pneg %p35
        $region22: #{tpu_custom_call.1} parent=19 // pred_check_branch
          %119 = sbr.rel (%p117) target = $region24
        $region23: #{tpu_custom_call.1} parent=19 // pred_region
          %s120 = sand.u32 %s25, 1
          %s121 = scalar_lea.sflag [#allocation3], %s120
          %s122 = sand.u32 %s25, 1
          %s123 = smul.addr %s122, 8
          %s124 = scalar_lea.vmem [#allocation2], %s123
          %126 = vsyncadd %s121, 0
          %s127 = smul.addr %s15, 8
          %s128 = scalar_lea.hbm %s0, %s127
          %s130 = sshll.u32 %s128, 4
          %s131 = int_to_ptr.hbm [resolvable:$true] %s130
          %s132 = sshll.u32 %s124, 4
          %s133 = int_to_ptr.vmem [resolvable:$true] %s132
          %135 = dma.hbm_to_vmem [thread:$0]  %s131, 128, %s133, %s121
        $region24: #{tpu_custom_call.1} parent=19 // pred_fallthru
          _
      $region20: #{tpu_custom_call.1} parent=5 // pred_fallthru
        _
      %p136 = scmp.le.s32.totalorder 1, %s15
      %p137 = scmp.lt.s32.totalorder %s15, 3
      %p138 = pnand %p136, %p137
      %p139 = pneg %p138
      // Predicated region
      $region25: #{tpu_custom_call.1} parent=5 // pred_check
        _
      $region26: #{tpu_custom_call.1} parent=5 // pred_check_branch
        %141 = sbr.rel (%p138) target = $region28
      $region27: #{tpu_custom_call.1} parent=5 // pred_region
        %s142 = ssub.s32 %s15, 1
        %s143 = sand.u32 %s28, 1
        %s144 = scalar_lea.sflag [#allocation3], %s143
        %s145 = sand.u32 %s28, 1
        %s146 = smul.addr %s145, 8
        %s147 = scalar_lea.vmem [#allocation2], %s146
        // Predicated region
        $region29: #{tpu_custom_call.1} parent=27 // pred_check
          %p148 = pneg %p41
        $region30: #{tpu_custom_call.1} parent=27 // pred_check_branch
          %150 = sbr.rel (%p148) target = $region32
        $region31: #{tpu_custom_call.1} parent=27 // pred_region
          %152 = dma.done %s144, 128
        $region32: #{tpu_custom_call.1} parent=27 // pred_fallthru
          _
        // Predicated region
        $region33: #{tpu_custom_call.1} parent=27 // pred_check
          %p153 = pneg %p62
        $region34: #{tpu_custom_call.1} parent=27 // pred_check_branch
          %155 = sbr.rel (%p153) target = $region36
        $region35: #{tpu_custom_call.1} parent=27 // pred_region
          %157 = dma.done [#allocation5], 16
        $region36: #{tpu_custom_call.1} parent=27 // pred_fallthru
          _
        %158 = sfence
        %s159 = sand.u32 %s28, 1
        %s160 = scalar_lea.sflag [#allocation3], %s159
        %s161 = sand.u32 %s28, 1
        %s162 = smul.addr %s161, 8
        %s163 = scalar_lea.vmem [#allocation2], %s162
        %p164 = pneg %p41
        %p165 = pneg %p38
        %p166 = pneg %p62
        %p167 = pneg %p59
        %p168 = pneg %p88
        %p169 = pneg %p85
        %s170 = sand.u32 %s75, 1
        %s171 = scalar_lea.sflag [#allocation4], %s170
        %s172 = sand.u32 %s75, 1
        %s173 = smul.addr %s172, 32
        %s174 = scalar_lea.vmem [#allocation7], %s173
        %s175 = smul.u32 4, %s20
        %s176 = sld [smem:[#allocation6]]
        %s177 = sld [smem:[#allocation6 + $0x1]]
        %s178 = sld [smem:[#allocation6 + $0x2]]
        %s179 = sld [smem:[#allocation6 + $0x3]]
        %s180 = sld [smem:[#allocation6 + $0x4]]
        %s181 = sld [smem:[#allocation6 + $0x5]]
        %v182 = vlaneseq
        %v183 = vand.u32 %v182, 127
        %v184 = vld [vmem:[%s147] sm:$0xff]
        %v185 = vunpack.c.0.s8 %v184
        %v186 = vunpack.c.1.s8 %v184
        %v187 = vunpack.c.2.s8 %v184
        %v188 = vunpack.c.3.s8 %v184
        %vm189 = vcmp.eq.s32.totalorder %v185, 1
        %vm190 = vcmp.eq.s32.totalorder %v186, 1
        %vm191 = vcmp.eq.s32.totalorder %v187, 1
        %vm192 = vcmp.eq.s32.totalorder %v188, 1
        %v193 = vstv %s177
        %v194 = vsel %vm189, %v193, 0.0
        %v195 = vsel %vm190, %v193, 0.0
        %v196 = vsel %vm191, %v193, 0.0
        %v197 = vsel %vm192, %v193, 0.0
        %vm198 = vcmp.eq.s32.totalorder %v185, 2
        %vm199 = vcmp.eq.s32.totalorder %v186, 2
        %vm200 = vcmp.eq.s32.totalorder %v187, 2
        %vm201 = vcmp.eq.s32.totalorder %v188, 2
        %v202 = vstv %s178
        %v203 = vsel %vm198, %v202, %v194
        %v204 = vsel %vm199, %v202, %v195
        %v205 = vsel %vm200, %v202, %v196
        %v206 = vsel %vm201, %v202, %v197
        %vm207 = vcmp.eq.s32.totalorder %v185, 3
        %vm208 = vcmp.eq.s32.totalorder %v186, 3
        %vm209 = vcmp.eq.s32.totalorder %v187, 3
        %vm210 = vcmp.eq.s32.totalorder %v188, 3
        %v211 = vstv %s179
        %v212 = vsel %vm207, %v211, %v203
        %v213 = vsel %vm208, %v211, %v204
        %v214 = vsel %vm209, %v211, %v205
        %v215 = vsel %vm210, %v211, %v206
        %vm216 = vcmp.eq.s32.totalorder %v185, 4
        %vm217 = vcmp.eq.s32.totalorder %v186, 4
        %vm218 = vcmp.eq.s32.totalorder %v187, 4
        %vm219 = vcmp.eq.s32.totalorder %v188, 4
        %v220 = vstv %s180
        %v221 = vsel %vm216, %v220, %v212
        %v222 = vsel %vm217, %v220, %v213
        %v223 = vsel %vm218, %v220, %v214
        %v224 = vsel %vm219, %v220, %v215
        %vm225 = vcmp.eq.s32.totalorder %v185, 5
        %vm226 = vcmp.eq.s32.totalorder %v186, 5
        %vm227 = vcmp.eq.s32.totalorder %v187, 5
        %vm228 = vcmp.eq.s32.totalorder %v188, 5
        %v229 = vstv %s181
        %v230 = vsel %vm225, %v229, %v221
        %v231 = vsel %vm226, %v229, %v222
        %v232 = vsel %vm227, %v229, %v223
        %v233 = vsel %vm228, %v229, %v224
        %vm234 = vcmp.ge.s32.totalorder %v183, 1
        %235 = vrot.lane.b32.xlu0 %v230, 1
        %v236 = vpop.permute.xlu0 %235
        %237 = vrot.lane.b32.xlu0 %v231, 1
        %v238 = vpop.permute.xlu0 %237
        %239 = vrot.lane.b32.xlu0 %v232, 1
        %v240 = vpop.permute.xlu0 %239
        %241 = vrot.lane.b32.xlu0 %v233, 1
        %v242 = vpop.permute.xlu0 %241
        %v243 = vsel %vm234, 1, 0
        %vm244 = vcmp.eq.s32.totalorder %v243, 1
        %v245 = vsel %vm244, %v236, 0.0
        %v246 = vsel %vm244, %v238, 0.0
        %v247 = vsel %vm244, %v240, 0.0
        %v248 = vsel %vm244, %v242, 0.0
        %249 = vrot.lane.b32.xlu0 %v245, 1
        %v250 = vpop.permute.xlu0 %249
        %251 = vrot.lane.b32.xlu0 %v246, 1
        %v252 = vpop.permute.xlu0 %251
        %253 = vrot.lane.b32.xlu0 %v247, 1
        %v254 = vpop.permute.xlu0 %253
        %255 = vrot.lane.b32.xlu0 %v248, 1
        %v256 = vpop.permute.xlu0 %255
        %v257 = vsel %vm244, %v250, 0.0
        %v258 = vsel %vm244, %v252, 0.0
        %v259 = vsel %vm244, %v254, 0.0
        %v260 = vsel %vm244, %v256, 0.0
        %v261 = vadd.f32 %v245, %v257
        %v262 = vadd.f32 %v246, %v258
        %v263 = vadd.f32 %v247, %v259
        %v264 = vadd.f32 %v248, %v260
        %vm265 = vcmp.ge.s32.totalorder %v183, 2
        %266 = vrot.lane.b32.xlu0 %v261, 2
        %v267 = vpop.permute.xlu0 %266
        %268 = vrot.lane.b32.xlu0 %v262, 2
        %v269 = vpop.permute.xlu0 %268
        %270 = vrot.lane.b32.xlu0 %v263, 2
        %v271 = vpop.permute.xlu0 %270
        %272 = vrot.lane.b32.xlu0 %v264, 2
        %v273 = vpop.permute.xlu0 %272
        %v274 = vsel %vm265, 1, 0
        %vm275 = vcmp.eq.s32.totalorder %v274, 1
        %v276 = vsel %vm275, %v267, 0.0
        %v277 = vsel %vm275, %v269, 0.0
        %v278 = vsel %vm275, %v271, 0.0
        %v279 = vsel %vm275, %v273, 0.0
        %v280 = vadd.f32 %v261, %v276
        %v281 = vadd.f32 %v262, %v277
        %v282 = vadd.f32 %v263, %v278
        %v283 = vadd.f32 %v264, %v279
        %vm284 = vcmp.ge.s32.totalorder %v183, 4
        %285 = vrot.lane.b32.xlu0 %v280, 4
        %v286 = vpop.permute.xlu0 %285
        %287 = vrot.lane.b32.xlu0 %v281, 4
        %v288 = vpop.permute.xlu0 %287
        %289 = vrot.lane.b32.xlu0 %v282, 4
        %v290 = vpop.permute.xlu0 %289
        %291 = vrot.lane.b32.xlu0 %v283, 4
        %v292 = vpop.permute.xlu0 %291
        %v293 = vsel %vm284, 1, 0
        %vm294 = vcmp.eq.s32.totalorder %v293, 1
        %v295 = vsel %vm294, %v286, 0.0
        %v296 = vsel %vm294, %v288, 0.0
        %v297 = vsel %vm294, %v290, 0.0
        %v298 = vsel %vm294, %v292, 0.0
        %v299 = vadd.f32 %v280, %v295
        %v300 = vadd.f32 %v281, %v296
        %v301 = vadd.f32 %v282, %v297
        %v302 = vadd.f32 %v283, %v298
        %vm303 = vcmp.ge.s32.totalorder %v183, 8
        %304 = vrot.lane.b32.xlu0 %v299, 8
        %v305 = vpop.permute.xlu0 %304
        %306 = vrot.lane.b32.xlu0 %v300, 8
        %v307 = vpop.permute.xlu0 %306
        %308 = vrot.lane.b32.xlu0 %v301, 8
        %v309 = vpop.permute.xlu0 %308
        %310 = vrot.lane.b32.xlu0 %v302, 8
        %v311 = vpop.permute.xlu0 %310
        %v312 = vsel %vm303, 1, 0
        %vm313 = vcmp.eq.s32.totalorder %v312, 1
        %v314 = vsel %vm313, %v305, 0.0
        %v315 = vsel %vm313, %v307, 0.0
        %v316 = vsel %vm313, %v309, 0.0
        %v317 = vsel %vm313, %v311, 0.0
        %v318 = vadd.f32 %v299, %v314
        %v319 = vadd.f32 %v300, %v315
        %v320 = vadd.f32 %v301, %v316
        %v321 = vadd.f32 %v302, %v317
        %vm322 = vcmp.ge.s32.totalorder %v183, 16
        %323 = vrot.lane.b32.xlu0 %v318, 16
        %v324 = vpop.permute.xlu0 %323
        %325 = vrot.lane.b32.xlu0 %v319, 16
        %v326 = vpop.permute.xlu0 %325
        %327 = vrot.lane.b32.xlu0 %v320, 16
        %v328 = vpop.permute.xlu0 %327
        %329 = vrot.lane.b32.xlu0 %v321, 16
        %v330 = vpop.permute.xlu0 %329
        %v331 = vsel %vm322, 1, 0
        %vm332 = vcmp.eq.s32.totalorder %v331, 1
        %v333 = vsel %vm332, %v324, 0.0
        %v334 = vsel %vm332, %v326, 0.0
        %v335 = vsel %vm332, %v328, 0.0
        %v336 = vsel %vm332, %v330, 0.0
        %v337 = vadd.f32 %v318, %v333
        %v338 = vadd.f32 %v319, %v334
        %v339 = vadd.f32 %v320, %v335
        %v340 = vadd.f32 %v321, %v336
        %vm341 = vcmp.ge.s32.totalorder %v183, 32
        %342 = vrot.lane.b32.xlu0 %v337, 32
        %v343 = vpop.permute.xlu0 %342
        %344 = vrot.lane.b32.xlu0 %v338, 32
        %v345 = vpop.permute.xlu0 %344
        %346 = vrot.lane.b32.xlu0 %v339, 32
        %v347 = vpop.permute.xlu0 %346
        %348 = vrot.lane.b32.xlu0 %v340, 32
        %v349 = vpop.permute.xlu0 %348
        %v350 = vsel %vm341, 1, 0
        %vm351 = vcmp.eq.s32.totalorder %v350, 1
        %v352 = vsel %vm351, %v343, 0.0
        %v353 = vsel %vm351, %v345, 0.0
        %v354 = vsel %vm351, %v347, 0.0
        %v355 = vsel %vm351, %v349, 0.0
        %v356 = vadd.f32 %v337, %v352
        %v357 = vadd.f32 %v338, %v353
        %v358 = vadd.f32 %v339, %v354
        %v359 = vadd.f32 %v340, %v355
        %vm360 = vcmp.ge.s32.totalorder %v183, 64
        %361 = vrot.lane.b32.xlu0 %v356, 64
        %v362 = vpop.permute.xlu0 %361
        %363 = vrot.lane.b32.xlu0 %v357, 64
        %v364 = vpop.permute.xlu0 %363
        %365 = vrot.lane.b32.xlu0 %v358, 64
        %v366 = vpop.permute.xlu0 %365
        %367 = vrot.lane.b32.xlu0 %v359, 64
        %v368 = vpop.permute.xlu0 %367
        %v369 = vsel %vm360, 1, 0
        %vm370 = vcmp.eq.s32.totalorder %v369, 1
        %v371 = vsel %vm370, %v362, 0.0
        %v372 = vsel %vm370, %v364, 0.0
        %v373 = vsel %vm370, %v366, 0.0
        %v374 = vsel %vm370, %v368, 0.0
        %v375 = vadd.f32 %v356, %v371
        %v376 = vadd.f32 %v357, %v372
        %v377 = vadd.f32 %v358, %v373
        %v378 = vadd.f32 %v359, %v374
        %v379 = vstv %s176
        %v380 = vadd.f32 %v379, %v375
        %v381 = vadd.f32 %v379, %v376
        %v382 = vadd.f32 %v379, %v377
        %v383 = vadd.f32 %v379, %v378
        %384 = vst [vmem:[%s174] sm:$0xff] %v380
        %385 = vst [vmem:[%s174 + $0x8] sm:$0xff] %v381
        %386 = vst [vmem:[%s174 + $0x10] sm:$0xff] %v382
        %387 = vst [vmem:[%s174 + $0x18] sm:$0xff] %v383
        %s388 = sand.u32 %s75, 1
        %s389 = scalar_lea.sflag [#allocation4], %s388
        %s390 = sand.u32 %s75, 1
        %s391 = smul.addr %s390, 32
        %s392 = scalar_lea.vmem [#allocation7], %s391
        // Predicated region
        $region37: #{tpu_custom_call.1} parent=27 // pred_check
          %p393 = pneg %p85
        $region38: #{tpu_custom_call.1} parent=27 // pred_check_branch
          %395 = sbr.rel (%p393) target = $region40
        $region39: #{tpu_custom_call.1} parent=27 // pred_region
          %s396 = smul.u32 4, %s20
          %398 = vsyncadd %s389, 0
          %s399 = smul.addr %s396, 8
          %s400 = scalar_lea.hbm %s2, %s399
          %s401 = sshll.u32 %s392, 4
          %s402 = int_to_ptr.vmem [resolvable:$true] %s401
          %s403 = sshll.u32 %s400, 4
          %s404 = int_to_ptr.hbm [resolvable:$true] %s403
          %409 = dma.vmem_to_hbm [thread:$0]  %s402, 512, %s404, %s389, 128, 128, 8
        $region40: #{tpu_custom_call.1} parent=27 // pred_fallthru
          _
      $region28: #{tpu_custom_call.1} parent=5 // pred_fallthru
        _
      %p410 = scmp.le.s32.totalorder 2, %s15
      // Predicated region
      $region41: #{tpu_custom_call.1} parent=5 // pred_check
        %p411 = pneg %p410
      $region42: #{tpu_custom_call.1} parent=5 // pred_check_branch
        %413 = sbr.rel (%p411) target = $region44
      $region43: #{tpu_custom_call.1} parent=5 // pred_region
        %s414 = ssub.s32 %s15, 2
        // Predicated region
        $region45: #{tpu_custom_call.1} parent=43 // pred_check
          %p415 = pneg %p91
        $region46: #{tpu_custom_call.1} parent=43 // pred_check_branch
          %417 = sbr.rel (%p415) target = $region48
        $region47: #{tpu_custom_call.1} parent=43 // pred_region
          %s418 = sand.u32 %s76, 1
          %s419 = scalar_lea.sflag [#allocation4], %s418
          %s420 = sand.u32 %s76, 1
          %s421 = smul.addr %s420, 32
          %s422 = scalar_lea.vmem [#allocation7], %s421
          %424 = dma.done %s419, 512
        $region48: #{tpu_custom_call.1} parent=43 // pred_fallthru
          _
      $region44: #{tpu_custom_call.1} parent=5 // pred_fallthru
        _
    $region6: #{tpu_custom_call.1} parent=1 // loop_footer
      %s19 = sadd.s32 1, %s15
    $region7: #{tpu_custom_call.1} parent=1 // loop_footer_branch
      %14 = sbr.rel target = $region3
    $region8: #{tpu_custom_call.1} parent=1 // loop_exit
      _
    %425 = vsyncpa [#allocation3], 1
    %s426 = scalar_lea.sflag [#allocation3], 1
    %427 = vsyncpa %s426, 1
    %428 = vsyncpa [#allocation4], 1
    %s429 = scalar_lea.sflag [#allocation4], 1
    %430 = vsyncpa %s429, 1
    %431 = vsyncpa [#allocation5], 1
    %s432 = scalar_lea.sflag [#allocation5], 1
    %433 = vsyncpa %s432, 1

</llo_original>
